<compile_context>
chip_gen: v7x
topology: tpu7x:2x2x1
jax: 0.10.0
libtpu: 0.0.40
codegen_flags: <defaults>
</compile_context>

<pallas_src>
import jax
import jax.numpy as jnp
import numpy as np
from jax.experimental import pallas as pl
from jax.experimental.pallas import tpu as pltpu


def _round_up(x, m):
    return (x + m - 1) // m * m


# ---------------------------------------------------------------------------
# Kernel 1: fused projection  XW = X @ [W_mu | W_ls]  (lane-padded to 128)
# ---------------------------------------------------------------------------
def project_kernel(x_ref, w_ref, xw_ref):
    xw_ref[...] = jnp.dot(
        x_ref[...], w_ref[...], preferred_element_type=jnp.float32
    ).astype(xw_ref.dtype)


# ---------------------------------------------------------------------------
# Kernel 2: tiled aggregation  OUT = A_norm @ XW + b_cat
#   grid = (rows, k-reduction); f32 accumulator scratch; bias in epilogue.
# ---------------------------------------------------------------------------
def aggregate_kernel(a_ref, xw_ref, b_ref, out_ref, acc_ref):
    k = pl.program_id(1)

    @pl.when(k == 0)
    def _():
        acc_ref[...] = jnp.zeros_like(acc_ref)

    acc_ref[...] += jnp.dot(
        a_ref[...], xw_ref[...], preferred_element_type=jnp.float32
    )

    @pl.when(k == pl.num_programs(1) - 1)
    def _():
        out_ref[...] = (acc_ref[...] + b_ref[...]).astype(out_ref.dtype)


def variational_linear_encoder(x, edge_index, w_mu, b_mu, w_ls, b_ls):
    """x: [N, C_in] f32, edge_index: [2, E] int32. Returns (mu, logstd) f32."""
    N, c_in = x.shape
    c_out = w_mu.shape[1]

    # ---- glue: dense GCN-normalized adjacency with self-loops ----
    src, dst = edge_index[0], edge_index[1]
    a = jnp.zeros((N, N), jnp.float32).at[dst, src].set(1.0)   # message j -> i
    a = jnp.maximum(a, jnp.eye(N, dtype=jnp.float32))          # self loops
    deg = jnp.sum(a, axis=1)
    d_inv_sqrt = jnp.where(deg > 0, jax.lax.rsqrt(deg), 0.0)
    a_norm = d_inv_sqrt[:, None] * a * d_inv_sqrt[None, :]

    # ---- fuse heads + pad output lanes to 128 ----
    c_cat = 2 * c_out
    c_pad = _round_up(max(c_cat, 128), 128)
    w_cat = jnp.concatenate([w_mu, w_ls], axis=1)
    w_cat = jnp.pad(w_cat, ((0, 0), (0, c_pad - c_cat)))
    b_cat = jnp.pad(jnp.concatenate([b_mu, b_ls]), (0, c_pad - c_cat))
    b_cat = b_cat.reshape(1, c_pad).astype(jnp.float32)

    # ---- tiling (256-multiples: good for v5e 128x128 and v6e/v7x 256x256 MXU)
    TM, TK = 256, 256
    n_pad = _round_up(N, max(TM, TK))
    x_p = jnp.pad(x, ((0, n_pad - N), (0, 0))).astype(jnp.bfloat16)
    a_p = jnp.pad(a_norm, ((0, n_pad - N), (0, n_pad - N))).astype(jnp.bfloat16)
    w_bf = w_cat.astype(jnp.bfloat16)

    # ---- kernel 1: XW = X @ W_cat  (row-tiled) ----
    xw = pl.pallas_call(
        project_kernel,
        out_shape=jax.ShapeDtypeStruct((n_pad, c_pad), jnp.bfloat16),
        grid=(n_pad // TM,),
        in_specs=[
            pl.BlockSpec((TM, c_in), lambda i: (i, 0)),
            pl.BlockSpec((c_in, c_pad), lambda i: (0, 0)),
        ],
        out_specs=pl.BlockSpec((TM, c_pad), lambda i: (i, 0)),
        compiler_params=pltpu.CompilerParams(
            dimension_semantics=("parallel",),
            vmem_limit_bytes=32 * 1024 * 1024,
        ),
        cost_estimate=pl.CostEstimate(
            flops=2 * n_pad * c_in * c_pad,
            transcendentals=0,
            bytes_accessed=n_pad * c_in * 2 + c_in * c_pad * 2
            + n_pad * c_pad * 2,
        ),
    )(x_p, w_bf)

    # ---- kernel 2: OUT = A_norm @ XW + b  (tiled, accumulator, epilogue) ----
    out = pl.pallas_call(
        aggregate_kernel,
        out_shape=jax.ShapeDtypeStruct((n_pad, c_pad), jnp.float32),
        grid=(n_pad // TM, n_pad // TK),
        in_specs=[
            pl.BlockSpec((TM, TK), lambda i, k: (i, k)),
            pl.BlockSpec((TK, c_pad), lambda i, k: (k, 0)),
            pl.BlockSpec((1, c_pad), lambda i, k: (0, 0)),
        ],
        out_specs=pl.BlockSpec((TM, c_pad), lambda i, k: (i, 0)),
        scratch_shapes=[pltpu.VMEM((TM, c_pad), jnp.float32)],
        compiler_params=pltpu.CompilerParams(
            dimension_semantics=("parallel", "arbitrary"),
            vmem_limit_bytes=32 * 1024 * 1024,
        ),
        cost_estimate=pl.CostEstimate(
            flops=2 * n_pad * n_pad * c_pad,
            transcendentals=0,
            bytes_accessed=n_pad * n_pad * 2 + n_pad * c_pad * 2
            + n_pad * c_pad * 4 + c_pad * 4,
        ),
    )(a_p, xw, b_cat)

    mu = out[:N, :c_out]
    logstd = out[:N, c_out:c_cat]
    return mu, logstd


def _reference(x, edge_index, w_mu, b_mu, w_ls, b_ls):
    N = x.shape[0]
    src, dst = edge_index[0], edge_index[1]
    a = jnp.zeros((N, N), jnp.float32).at[dst, src].set(1.0)
    a = jnp.maximum(a, jnp.eye(N, dtype=jnp.float32))
    deg = jnp.sum(a, axis=1)
    dis = jnp.where(deg > 0, 1.0 / jnp.sqrt(deg), 0.0)
    a_norm = dis[:, None] * a * dis[None, :]
    ax = a_norm @ x
    return ax @ w_mu + b_mu[None, :], ax @ w_ls + b_ls[None, :]


if __name__ == "__main__":
    key = jax.random.PRNGKey(0)
    N, E, C_IN, C_OUT = 16, 40, 16, 8

    k1, k2, k3, k4, k5, k6 = jax.random.split(key, 6)
    x = jax.random.normal(k1, (N, C_IN), jnp.float32)
    edge_index = jax.random.randint(k2, (2, E), 0, N, jnp.int32)

    scale = 1.0 / jnp.sqrt(jnp.float32(C_IN))
    w_mu = jax.random.uniform(k3, (C_IN, C_OUT), jnp.float32, -scale, scale)
    w_ls = jax.random.uniform(k4, (C_IN, C_OUT), jnp.float32, -scale, scale)
    b_mu = jax.random.uniform(k5, (C_OUT,), jnp.float32, -scale, scale)
    b_ls = jax.random.uniform(k6, (C_OUT,), jnp.float32, -scale, scale)

    mu, logstd = variational_linear_encoder(x, edge_index, w_mu, b_mu, w_ls, b_ls)
    jax.block_until_ready((mu, logstd))

    mu_ref, ls_ref = _reference(x, edge_index, w_mu, b_mu, w_ls, b_ls)
    # bf16 inputs with f32 accumulation -> loosened tolerance vs. pure f32.
    np.testing.assert_allclose(np.asarray(mu), np.asarray(mu_ref),
                               rtol=3e-2, atol=3e-2)
    np.testing.assert_allclose(np.asarray(logstd), np.asarray(ls_ref),
                               rtol=3e-2, atol=3e-2)

    print("KERNEL_OK")
</pallas_src>

<mosaic_0001>
module attributes {stable_mosaic.version = 11 : i64} {
  func.func @project_kernel(%arg0: i32, %arg1: memref<256x16xbf16, #tpu.memory_space<vmem>>, %arg2: memref<16x128xbf16, #tpu.memory_space<vmem>>, %arg3: memref<256x128xbf16, #tpu.memory_space<vmem>>) attributes {dimension_semantics = [#tpu.dimension_semantics<parallel>], iteration_bounds = array<i64: 1>, scalar_prefetch = 0 : i64, scratch_operands = 0 : i64, tpu.core_type = #tpu.core_type<tc>, window_params = [{transform_indices = @transform_0, window_bounds = array<i64: 256, 16>}, {pipeline_mode = #tpu.pipeline_mode<synchronous>, transform_indices = @transform_1, window_bounds = array<i64: 16, 128>}, {transform_indices = @transform_2, window_bounds = array<i64: 256, 128>}]} {
    %c0 = arith.constant 0 : index
    %c0_0 = arith.constant 0 : index
    %0 = vector.load %arg1[%c0, %c0_0] : memref<256x16xbf16, #tpu.memory_space<vmem>>, vector<256x16xbf16>
    %c0_1 = arith.constant 0 : index
    %c0_2 = arith.constant 0 : index
    %1 = vector.load %arg2[%c0_1, %c0_2] : memref<16x128xbf16, #tpu.memory_space<vmem>>, vector<16x128xbf16>
    %cst = arith.constant dense<0.000000e+00> : vector<256x128xf32>
    %2 = tpu.matmul %0, %1, %cst {dimension_numbers = #tpu.dot_dimension_numbers<[1], [0], [0], [1], [0, 0, 1, 1], [], []>} : vector<256x16xbf16>, vector<16x128xbf16>, vector<256x128xf32> -> vector<256x128xf32>
    %3 = arith.truncf %2 : vector<256x128xf32> to vector<256x128xbf16>
    %c0_3 = arith.constant 0 : index
    %c0_4 = arith.constant 0 : index
    %4 = vector.load %arg3[%c0_3, %c0_4] : memref<256x128xbf16, #tpu.memory_space<vmem>>, vector<256x128xbf16>
    tpu.vector_store %arg3[%c0_3, %c0_4], %3 {strides = array<i32>} : memref<256x128xbf16, #tpu.memory_space<vmem>>, vector<256x128xbf16>,
    return
  }
  func.func @transform_0(%arg0: i32) -> (i32, i32) {
    %c0_i32 = arith.constant 0 : i32
    %c0_i32_0 = arith.constant 0 : i32
    return %arg0, %c0_i32 : i32, i32
  }
  func.func @transform_1(%arg0: i32) -> (i32, i32) {
    %c0_i32 = arith.constant 0 : i32
    %c0_i32_0 = arith.constant 0 : i32
    %c0_i32_1 = arith.constant 0 : i32
    return %c0_i32, %c0_i32_0 : i32, i32
  }
  func.func @transform_2(%arg0: i32) -> (i32, i32) {
    %c0_i32 = arith.constant 0 : i32
    %c0_i32_0 = arith.constant 0 : i32
    return %arg0, %c0_i32 : i32, i32
  }
}

</mosaic_0001>

<llo_original>
// kernel: tpu_custom_call.1
$region0: #{tpu_custom_call.1}
  #allocation0 [shape = 'u32[]', space=smem, size = 0x4, offset = 0x4, fixed_abs, tag = 'smem constant byte address 0x4 - core index']
  #allocation1 [shape = 'u32[144,128]{1,0:T(1,128)}', space=vmem, size = 0x12000, scoped, tag = 'internal scratch']
  %s0 = inlined_call_operand.vmem [shape: bf16[256,16], index: 0, kind: input, shape index: {}]
  %s1 = inlined_call_operand.vmem [shape: bf16[16,128], index: 1, kind: input, shape index: {}]
  %s2 = inlined_call_operand.hbm [shape: bf16[256,128], index: 2, kind: output, shape index: {}]
  %s3 = sld [smem:[#allocation0]]
  $region18: #{tpu_custom_call.1} parent=0
    _
  %s5 = ssub.s32 1, %s3
  %s6 = scalar_select 0, %s5, %s3
  $region1: #{tpu_custom_call.1} parent=0
    #allocation2 [shape = 'u8[65536]{0}', space=vmem, size = 0x10000, scoped, tag = 'output window, operand 0, single buffered']
    #allocation3 [shape = 's32[1]{0}', space=sflag, size = 0x4, scoped, tag = 'scoped memory for tpu_custom_call.1']
    %7 = vsyncpa [#allocation3], 0
    // Predicated region
    $region2: #{tpu_custom_call.1} parent=1 // pred_check
      _
    $region3: #{tpu_custom_call.1} parent=1 // pred_check_branch
      %9 = sbr.rel (0) target = $region5
    $region4: #{tpu_custom_call.1} parent=1 // pred_region
      _
    $region5: #{tpu_custom_call.1} parent=1 // pred_fallthru
      _
    // Predicated region
    $region6: #{tpu_custom_call.1} parent=1 // pred_check
      _
    $region7: #{tpu_custom_call.1} parent=1 // pred_check_branch
      %11 = sbr.rel (0) target = $region9
    $region8: #{tpu_custom_call.1} parent=1 // pred_region
      _
    $region9: #{tpu_custom_call.1} parent=1 // pred_fallthru
      _
    %v13 = vld [vmem:[%s0] sm:$0xf]
    %v14 = vld [vmem:[%s0 + $0x4] sm:$0xf]
    %v15 = vld [vmem:[%s0 + $0x8] sm:$0xf]
    %v16 = vld [vmem:[%s0 + $0xc] sm:$0xf]
    %v17 = vld [vmem:[%s0 + $0x10] sm:$0xf]
    %v18 = vld [vmem:[%s0 + $0x14] sm:$0xf]
    %v19 = vld [vmem:[%s0 + $0x18] sm:$0xf]
    %v20 = vld [vmem:[%s0 + $0x1c] sm:$0xf]
    %v21 = vld [vmem:[%s0 + $0x20] sm:$0xf]
    %v22 = vld [vmem:[%s0 + $0x24] sm:$0xf]
    %v23 = vld [vmem:[%s0 + $0x28] sm:$0xf]
    %v24 = vld [vmem:[%s0 + $0x2c] sm:$0xf]
    %v25 = vld [vmem:[%s0 + $0x30] sm:$0xf]
    %v26 = vld [vmem:[%s0 + $0x34] sm:$0xf]
    %v27 = vld [vmem:[%s0 + $0x38] sm:$0xf]
    %v28 = vld [vmem:[%s0 + $0x3c] sm:$0xf]
    %v29 = vld [vmem:[%s0 + $0x40] sm:$0xf]
    %v30 = vld [vmem:[%s0 + $0x44] sm:$0xf]
    %v31 = vld [vmem:[%s0 + $0x48] sm:$0xf]
    %v32 = vld [vmem:[%s0 + $0x4c] sm:$0xf]
    %v33 = vld [vmem:[%s0 + $0x50] sm:$0xf]
    %v34 = vld [vmem:[%s0 + $0x54] sm:$0xf]
    %v35 = vld [vmem:[%s0 + $0x58] sm:$0xf]
    %v36 = vld [vmem:[%s0 + $0x5c] sm:$0xf]
    %v37 = vld [vmem:[%s0 + $0x60] sm:$0xf]
    %v38 = vld [vmem:[%s0 + $0x64] sm:$0xf]
    %v39 = vld [vmem:[%s0 + $0x68] sm:$0xf]
    %v40 = vld [vmem:[%s0 + $0x6c] sm:$0xf]
    %v41 = vld [vmem:[%s0 + $0x70] sm:$0xf]
    %v42 = vld [vmem:[%s0 + $0x74] sm:$0xf]
    %v43 = vld [vmem:[%s0 + $0x78] sm:$0xf]
    %v44 = vld [vmem:[%s0 + $0x7c] sm:$0xf]
    %v45 = vld [vmem:[%s1] sm:$0xf]
    %v46 = vld [vmem:[%s1 + $0x4] sm:$0xf]
    %v79 = vunpack.c.l.b16 %v13
    %v80 = vunpack.c.l.b16 %v14
    %v81 = vunpack.c.l.b16 %v15
    %v82 = vunpack.c.l.b16 %v16
    %v83 = vunpack.c.l.b16 %v17
    %v84 = vunpack.c.l.b16 %v18
    %v85 = vunpack.c.l.b16 %v19
    %v86 = vunpack.c.l.b16 %v20
    %v87 = vunpack.c.l.b16 %v21
    %v88 = vunpack.c.l.b16 %v22
    %v89 = vunpack.c.l.b16 %v23
    %v90 = vunpack.c.l.b16 %v24
    %v91 = vunpack.c.l.b16 %v25
    %v92 = vunpack.c.l.b16 %v26
    %v93 = vunpack.c.l.b16 %v27
    %v94 = vunpack.c.l.b16 %v28
    %v95 = vunpack.c.l.b16 %v29
    %v96 = vunpack.c.l.b16 %v30
    %v97 = vunpack.c.l.b16 %v31
    %v98 = vunpack.c.l.b16 %v32
    %v99 = vunpack.c.l.b16 %v33
    %v100 = vunpack.c.l.b16 %v34
    %v101 = vunpack.c.l.b16 %v35
    %v102 = vunpack.c.l.b16 %v36
    %v103 = vunpack.c.l.b16 %v37
    %v104 = vunpack.c.l.b16 %v38
    %v105 = vunpack.c.l.b16 %v39
    %v106 = vunpack.c.l.b16 %v40
    %v107 = vunpack.c.l.b16 %v41
    %v108 = vunpack.c.l.b16 %v42
    %v109 = vunpack.c.l.b16 %v43
    %v110 = vunpack.c.l.b16 %v44
    %v111 = vpack.c.b16 %v80, %v79
    %v112 = vpack.c.b16 %v82, %v81
    %v113 = vpack.c.b16 %v84, %v83
    %v114 = vpack.c.b16 %v86, %v85
    %v115 = vpack.c.b16 %v88, %v87
    %v116 = vpack.c.b16 %v90, %v89
    %v117 = vpack.c.b16 %v92, %v91
    %v118 = vpack.c.b16 %v94, %v93
    %v119 = vpack.c.b16 %v96, %v95
    %v120 = vpack.c.b16 %v98, %v97
    %v121 = vpack.c.b16 %v100, %v99
    %v122 = vpack.c.b16 %v102, %v101
    %v123 = vpack.c.b16 %v104, %v103
    %v124 = vpack.c.b16 %v106, %v105
    %v125 = vpack.c.b16 %v108, %v107
    %v126 = vpack.c.b16 %v110, %v109
    %v129 = vunpack.c.l.b16 %v45
    %v130 = vunpack.c.l.b16 %v46
    %v131 = vpack.c.b16 %v130, %v129
    %vm133 = vcmask 130048
    %v135 = vsel %vm133, %v111, 0
    %v138 = vsel %vm133, %v112, 0
    %v141 = vsel %vm133, %v113, 0
    %v144 = vsel %vm133, %v114, 0
    %v147 = vsel %vm133, %v115, 0
    %v150 = vsel %vm133, %v116, 0
    %v153 = vsel %vm133, %v117, 0
    %v156 = vsel %vm133, %v118, 0
    %v159 = vsel %vm133, %v119, 0
    %v162 = vsel %vm133, %v120, 0
    %v165 = vsel %vm133, %v121, 0
    %v168 = vsel %vm133, %v122, 0
    %v171 = vsel %vm133, %v123, 0
    %v174 = vsel %vm133, %v124, 0
    %v177 = vsel %vm133, %v125, 0
    %v180 = vsel %vm133, %v126, 0
    %182 = vmatprep.subr.bf16.mxu0 0
    %183 = vmatpush1.bf16.msra.mxu0 %v131
    %184 = vmatprep.subr.bf16.mxu0 0
    %185 = vmatpush1.bf16.msra.mxu0 0
    %186 = vmatprep.subr.bf16.mxu0 0
    %187 = vmatpush1.bf16.msra.mxu0 0
    %188 = vmatprep.subr.bf16.mxu0 0
    %189 = vmatpush1.bf16.msra.mxu0 0
    %190 = vmatprep.subr.bf16.mxu0 0
    %191 = vmatpush1.bf16.msra.mxu0 0
    %192 = vmatprep.subr.bf16.mxu0 0
    %193 = vmatpush1.bf16.msra.mxu0 0
    %194 = vmatprep.subr.bf16.mxu0 0
    %195 = vmatpush1.bf16.msra.mxu0 0
    %196 = vmatprep.subr.bf16.mxu0 0
    %197 = vmatpush1.bf16.msra.mxu0 0
    %198 = vmatprep.subr.bf16.mxu0 0
    %199 = vmatpush1.bf16.msra.mxu0 0
    %200 = vmatprep.subr.bf16.mxu0 0
    %201 = vmatpush1.bf16.msra.mxu0 0
    %202 = vmatprep.subr.bf16.mxu0 0
    %203 = vmatpush1.bf16.msra.mxu0 0
    %204 = vmatprep.subr.bf16.mxu0 0
    %205 = vmatpush1.bf16.msra.mxu0 0
    %206 = vmatprep.subr.bf16.mxu0 0
    %207 = vmatpush1.bf16.msra.mxu0 0
    %208 = vmatprep.subr.bf16.mxu0 0
    %209 = vmatpush1.bf16.msra.mxu0 0
    %210 = vmatprep.subr.bf16.mxu0 0
    %211 = vmatpush1.bf16.msra.mxu0 0
    %212 = vmatprep.subr.bf16.mxu0 0
    %213 = vmatpush1.bf16.msra.mxu0 0
    %214 = vmatprep.mubr.bf16.mxu0 0
    %215 = vmatmul.mubr.bf16.gmra.mrb[0].mxu0 %v135
    %v216 = vpop.f32.mrb[0].mxu0
    %v217 = vadd.f32 0.0, %v216
    %v218 = vpop.f32.mrb[0].mxu0
    %v219 = vpop.f32.mrb[0].mxu0
    %v220 = vadd.f32 0.0, %v219
    %v221 = vpop.f32.mrb[0].mxu0
    %222 = vmatprep.mubr.bf16.mxu0 0
    %223 = vmatmul.mubr.bf16.gmra.mrb[0].mxu0 %v138
    %v224 = vpop.f32.mrb[0].mxu0
    %v225 = vadd.f32 0.0, %v224
    %v226 = vpop.f32.mrb[0].mxu0
    %v227 = vpop.f32.mrb[0].mxu0
    %v228 = vadd.f32 0.0, %v227
    %v229 = vpop.f32.mrb[0].mxu0
    %230 = vmatprep.mubr.bf16.mxu0 0
    %231 = vmatmul.mubr.bf16.gmra.mrb[0].mxu0 %v141
    %v232 = vpop.f32.mrb[0].mxu0
    %v233 = vadd.f32 0.0, %v232
    %v234 = vpop.f32.mrb[0].mxu0
    %v235 = vpop.f32.mrb[0].mxu0
    %v236 = vadd.f32 0.0, %v235
    %v237 = vpop.f32.mrb[0].mxu0
    %238 = vmatprep.mubr.bf16.mxu0 0
    %239 = vmatmul.mubr.bf16.gmra.mrb[0].mxu0 %v144
    %v240 = vpop.f32.mrb[0].mxu0
    %v241 = vadd.f32 0.0, %v240
    %v242 = vpop.f32.mrb[0].mxu0
    %v243 = vpop.f32.mrb[0].mxu0
    %v244 = vadd.f32 0.0, %v243
    %v245 = vpop.f32.mrb[0].mxu0
    %246 = vmatprep.mubr.bf16.mxu0 0
    %247 = vmatmul.mubr.bf16.gmra.mrb[0].mxu0 %v147
    %v248 = vpop.f32.mrb[0].mxu0
    %v249 = vadd.f32 0.0, %v248
    %v250 = vpop.f32.mrb[0].mxu0
    %v251 = vpop.f32.mrb[0].mxu0
    %v252 = vadd.f32 0.0, %v251
    %v253 = vpop.f32.mrb[0].mxu0
    %254 = vmatprep.mubr.bf16.mxu0 0
    %255 = vmatmul.mubr.bf16.gmra.mrb[0].mxu0 %v150
    %v256 = vpop.f32.mrb[0].mxu0
    %v257 = vadd.f32 0.0, %v256
    %v258 = vpop.f32.mrb[0].mxu0
    %v259 = vpop.f32.mrb[0].mxu0
    %v260 = vadd.f32 0.0, %v259
    %v261 = vpop.f32.mrb[0].mxu0
    %262 = vmatprep.mubr.bf16.mxu0 0
    %263 = vmatmul.mubr.bf16.gmra.mrb[0].mxu0 %v153
    %v264 = vpop.f32.mrb[0].mxu0
    %v265 = vadd.f32 0.0, %v264
    %v266 = vpop.f32.mrb[0].mxu0
    %v267 = vpop.f32.mrb[0].mxu0
    %v268 = vadd.f32 0.0, %v267
    %v269 = vpop.f32.mrb[0].mxu0
    %270 = vmatprep.mubr.bf16.mxu0 0
    %271 = vmatmul.mubr.bf16.gmra.mrb[0].mxu0 %v156
    %v272 = vpop.f32.mrb[0].mxu0
    %v273 = vadd.f32 0.0, %v272
    %v274 = vpop.f32.mrb[0].mxu0
    %v275 = vpop.f32.mrb[0].mxu0
    %v276 = vadd.f32 0.0, %v275
    %v277 = vpop.f32.mrb[0].mxu0
    %278 = vmatprep.mubr.bf16.mxu0 0
    %279 = vmatmul.mubr.bf16.gmra.mrb[0].mxu0 %v159
    %v280 = vpop.f32.mrb[0].mxu0
    %v281 = vadd.f32 0.0, %v280
    %v282 = vpop.f32.mrb[0].mxu0
    %v283 = vpop.f32.mrb[0].mxu0
    %v284 = vadd.f32 0.0, %v283
    %v285 = vpop.f32.mrb[0].mxu0
    %286 = vmatprep.mubr.bf16.mxu0 0
    %287 = vmatmul.mubr.bf16.gmra.mrb[0].mxu0 %v162
    %v288 = vpop.f32.mrb[0].mxu0
    %v289 = vadd.f32 0.0, %v288
    %v290 = vpop.f32.mrb[0].mxu0
    %v291 = vpop.f32.mrb[0].mxu0
    %v292 = vadd.f32 0.0, %v291
    %v293 = vpop.f32.mrb[0].mxu0
    %294 = vmatprep.mubr.bf16.mxu0 0
    %295 = vmatmul.mubr.bf16.gmra.mrb[0].mxu0 %v165
    %v296 = vpop.f32.mrb[0].mxu0
    %v297 = vadd.f32 0.0, %v296
    %v298 = vpop.f32.mrb[0].mxu0
    %v299 = vpop.f32.mrb[0].mxu0
    %v300 = vadd.f32 0.0, %v299
    %v301 = vpop.f32.mrb[0].mxu0
    %302 = vmatprep.mubr.bf16.mxu0 0
    %303 = vmatmul.mubr.bf16.gmra.mrb[0].mxu0 %v168
    %v304 = vpop.f32.mrb[0].mxu0
    %v305 = vadd.f32 0.0, %v304
    %v306 = vpop.f32.mrb[0].mxu0
    %v307 = vpop.f32.mrb[0].mxu0
    %v308 = vadd.f32 0.0, %v307
    %v309 = vpop.f32.mrb[0].mxu0
    %310 = vmatprep.mubr.bf16.mxu0 0
    %311 = vmatmul.mubr.bf16.gmra.mrb[0].mxu0 %v171
    %v312 = vpop.f32.mrb[0].mxu0
    %v313 = vadd.f32 0.0, %v312
    %v314 = vpop.f32.mrb[0].mxu0
    %v315 = vpop.f32.mrb[0].mxu0
    %v316 = vadd.f32 0.0, %v315
    %v317 = vpop.f32.mrb[0].mxu0
    %318 = vmatprep.mubr.bf16.mxu0 0
    %319 = vmatmul.mubr.bf16.gmra.mrb[0].mxu0 %v174
    %v320 = vpop.f32.mrb[0].mxu0
    %v321 = vadd.f32 0.0, %v320
    %v322 = vpop.f32.mrb[0].mxu0
    %v323 = vpop.f32.mrb[0].mxu0
    %v324 = vadd.f32 0.0, %v323
    %v325 = vpop.f32.mrb[0].mxu0
    %326 = vmatprep.mubr.bf16.mxu0 0
    %327 = vmatmul.mubr.bf16.gmra.mrb[0].mxu0 %v177
    %v328 = vpop.f32.mrb[0].mxu0
    %v329 = vadd.f32 0.0, %v328
    %v330 = vpop.f32.mrb[0].mxu0
    %v331 = vpop.f32.mrb[0].mxu0
    %v332 = vadd.f32 0.0, %v331
    %v333 = vpop.f32.mrb[0].mxu0
    %334 = vmatprep.mubr.bf16.mxu0 0
    %335 = vmatmul.mubr.bf16.gmra.mrb[0].mxu0 %v180
    %v336 = vpop.f32.mrb[0].mxu0
    %v337 = vadd.f32 0.0, %v336
    %v338 = vpop.f32.mrb[0].mxu0
    %v339 = vpop.f32.mrb[0].mxu0
    %v340 = vadd.f32 0.0, %v339
    %v341 = vpop.f32.mrb[0].mxu0
    %342 = vdwg.mxu0
    %v343 = vpack.c.bf16 %v220, %v217
    %v344 = vpack.c.bf16 %v228, %v225
    %v345 = vpack.c.bf16 %v236, %v233
    %v346 = vpack.c.bf16 %v244, %v241
    %v347 = vpack.c.bf16 %v252, %v249
    %v348 = vpack.c.bf16 %v260, %v257
    %v349 = vpack.c.bf16 %v268, %v265
    %v350 = vpack.c.bf16 %v276, %v273
    %v351 = vpack.c.bf16 %v284, %v281
    %v352 = vpack.c.bf16 %v292, %v289
    %v353 = vpack.c.bf16 %v300, %v297
    %v354 = vpack.c.bf16 %v308, %v305
    %v355 = vpack.c.bf16 %v316, %v313
    %v356 = vpack.c.bf16 %v324, %v321
    %v357 = vpack.c.bf16 %v332, %v329
    %v358 = vpack.c.bf16 %v340, %v337
    %v375 = vunpack.c.l.b16 %v343
    %v376 = vunpack.c.h.b16 %v343
    %v377 = vunpack.c.l.b16 %v344
    %v378 = vunpack.c.h.b16 %v344
    %v379 = vunpack.c.l.b16 %v345
    %v380 = vunpack.c.h.b16 %v345
    %v381 = vunpack.c.l.b16 %v346
    %v382 = vunpack.c.h.b16 %v346
    %v383 = vunpack.c.l.b16 %v347
    %v384 = vunpack.c.h.b16 %v347
    %v385 = vunpack.c.l.b16 %v348
    %v386 = vunpack.c.h.b16 %v348
    %v387 = vunpack.c.l.b16 %v349
    %v388 = vunpack.c.h.b16 %v349
    %v389 = vunpack.c.l.b16 %v350
    %v390 = vunpack.c.h.b16 %v350
    %v391 = vunpack.c.l.b16 %v351
    %v392 = vunpack.c.h.b16 %v351
    %v393 = vunpack.c.l.b16 %v352
    %v394 = vunpack.c.h.b16 %v352
    %v395 = vunpack.c.l.b16 %v353
    %v396 = vunpack.c.h.b16 %v353
    %v397 = vunpack.c.l.b16 %v354
    %v398 = vunpack.c.h.b16 %v354
    %v399 = vunpack.c.l.b16 %v355
    %v400 = vunpack.c.h.b16 %v355
    %v401 = vunpack.c.l.b16 %v356
    %v402 = vunpack.c.h.b16 %v356
    %v403 = vunpack.c.l.b16 %v357
    %v404 = vunpack.c.h.b16 %v357
    %v405 = vunpack.c.l.b16 %v358
    %v406 = vunpack.c.h.b16 %v358
    %v407 = vpack.c.b16 %v375, %v375
    %v408 = vpack.c.b16 %v376, %v376
    %v409 = vpack.c.b16 %v377, %v377
    %v410 = vpack.c.b16 %v378, %v378
    %v411 = vpack.c.b16 %v379, %v379
    %v412 = vpack.c.b16 %v380, %v380
    %v413 = vpack.c.b16 %v381, %v381
    %v414 = vpack.c.b16 %v382, %v382
    %v415 = vpack.c.b16 %v383, %v383
    %v416 = vpack.c.b16 %v384, %v384
    %v417 = vpack.c.b16 %v385, %v385
    %v418 = vpack.c.b16 %v386, %v386
    %v419 = vpack.c.b16 %v387, %v387
    %v420 = vpack.c.b16 %v388, %v388
    %v421 = vpack.c.b16 %v389, %v389
    %v422 = vpack.c.b16 %v390, %v390
    %v423 = vpack.c.b16 %v391, %v391
    %v424 = vpack.c.b16 %v392, %v392
    %v425 = vpack.c.b16 %v393, %v393
    %v426 = vpack.c.b16 %v394, %v394
    %v427 = vpack.c.b16 %v395, %v395
    %v428 = vpack.c.b16 %v396, %v396
    %v429 = vpack.c.b16 %v397, %v397
    %v430 = vpack.c.b16 %v398, %v398
    %v431 = vpack.c.b16 %v399, %v399
    %v432 = vpack.c.b16 %v400, %v400
    %v433 = vpack.c.b16 %v401, %v401
    %v434 = vpack.c.b16 %v402, %v402
    %v435 = vpack.c.b16 %v403, %v403
    %v436 = vpack.c.b16 %v404, %v404
    %v437 = vpack.c.b16 %v405, %v405
    %v438 = vpack.c.b16 %v406, %v406
    %471 = vst [vmem:[#allocation2] sm:$0xf] %v407
    %472 = vst [vmem:[#allocation2 + $0x4] sm:$0xf] %v408
    %473 = vst [vmem:[#allocation2 + $0x8] sm:$0xf] %v409
    %474 = vst [vmem:[#allocation2 + $0xc] sm:$0xf] %v410
    %475 = vst [vmem:[#allocation2 + $0x10] sm:$0xf] %v411
    %476 = vst [vmem:[#allocation2 + $0x14] sm:$0xf] %v412
    %477 = vst [vmem:[#allocation2 + $0x18] sm:$0xf] %v413
    %478 = vst [vmem:[#allocation2 + $0x1c] sm:$0xf] %v414
    %479 = vst [vmem:[#allocation2 + $0x20] sm:$0xf] %v415
    %480 = vst [vmem:[#allocation2 + $0x24] sm:$0xf] %v416
    %481 = vst [vmem:[#allocation2 + $0x28] sm:$0xf] %v417
    %482 = vst [vmem:[#allocation2 + $0x2c] sm:$0xf] %v418
    %483 = vst [vmem:[#allocation2 + $0x30] sm:$0xf] %v419
    %484 = vst [vmem:[#allocation2 + $0x34] sm:$0xf] %v420
    %485 = vst [vmem:[#allocation2 + $0x38] sm:$0xf] %v421
    %486 = vst [vmem:[#allocation2 + $0x3c] sm:$0xf] %v422
    %487 = vst [vmem:[#allocation2 + $0x40] sm:$0xf] %v423
    %488 = vst [vmem:[#allocation2 + $0x44] sm:$0xf] %v424
    %489 = vst [vmem:[#allocation2 + $0x48] sm:$0xf] %v425
    %490 = vst [vmem:[#allocation2 + $0x4c] sm:$0xf] %v426
    %491 = vst [vmem:[#allocation2 + $0x50] sm:$0xf] %v427
    %492 = vst [vmem:[#allocation2 + $0x54] sm:$0xf] %v428
    %493 = vst [vmem:[#allocation2 + $0x58] sm:$0xf] %v429
    %494 = vst [vmem:[#allocation2 + $0x5c] sm:$0xf] %v430
    %495 = vst [vmem:[#allocation2 + $0x60] sm:$0xf] %v431
    %496 = vst [vmem:[#allocation2 + $0x64] sm:$0xf] %v432
    %497 = vst [vmem:[#allocation2 + $0x68] sm:$0xf] %v433
    %498 = vst [vmem:[#allocation2 + $0x6c] sm:$0xf] %v434
    %499 = vst [vmem:[#allocation2 + $0x70] sm:$0xf] %v435
    %500 = vst [vmem:[#allocation2 + $0x74] sm:$0xf] %v436
    %501 = vst [vmem:[#allocation2 + $0x78] sm:$0xf] %v437
    %502 = vst [vmem:[#allocation2 + $0x7c] sm:$0xf] %v438
    // Predicated region
    $region10: #{tpu_custom_call.1} parent=1 // pred_check
      _
    $region11: #{tpu_custom_call.1} parent=1 // pred_check_branch
      %504 = sbr.rel (0) target = $region13
    $region12: #{tpu_custom_call.1} parent=1 // pred_region
      %s506 = ssub.s32 2048, 2048
      %507 = vsyncadd [#allocation3], %s506
      %s508 = sshll.u32 [#allocation2], 4
      %s509 = int_to_ptr.vmem [resolvable:$true] %s508
      %514 = dma.vmem_to_hbm [thread:$0]  %s509, 2048, %s2, [#allocation3], 64, 64, 4
    $region13: #{tpu_custom_call.1} parent=1 // pred_fallthru
      _
    // Predicated region
    $region14: #{tpu_custom_call.1} parent=1 // pred_check
      _
    $region15: #{tpu_custom_call.1} parent=1 // pred_check_branch
      %516 = sbr.rel (0) target = $region17
    $region16: #{tpu_custom_call.1} parent=1 // pred_region
      %517 = dma.done [#allocation3], 2048
    $region17: #{tpu_custom_call.1} parent=1 // pred_fallthru
      _
    %518 = vsyncpa [#allocation3], 1

</llo_original>
